<compile_context>
chip_gen: v5e
topology: v5e:2x2
jax: 0.10.0
libtpu: 0.0.40
codegen_flags: <defaults>
</compile_context>

<pallas_src>
import functools

import jax
import jax.numpy as jnp
from jax import lax
from jax.experimental import pallas as pl
from jax.experimental.pallas import tpu as pltpu


def _sublane_multiple(dtype):
    itemsize = jnp.dtype(dtype).itemsize
    return {4: 8, 2: 16, 1: 32}.get(itemsize, 8)


def _kernel(q_ref, y_ref, w_ref, o_ref, *, n, temperature, training):
    """q_ref, y_ref: (TB, N) input-dtype tiles; w_ref: (1, N) f32; o_ref: (TB, N+1)."""
    q = q_ref[...].astype(jnp.float32)
    y = y_ref[...].astype(jnp.float32)
    w = w_ref[...]                                     # f32; pre-scaled by 1/T when training

    tb, n_out = o_ref.shape
    qy = q * y                                         # (TB, N)
    s = jnp.sum(qy, axis=-1, keepdims=True)            # (TB, 1)

    if training:
        inv_t = 1.0 / float(temperature)
        s1 = (1.0 - s) * inv_t                         # z1 / T
        s2 = qy * w                                    # z2 / T (T already folded into w)
        m = jnp.maximum(s1, jnp.max(s2, axis=-1, keepdims=True))
        e1 = jnp.exp(s1 - m)                           # (TB, 1)
        e2 = jnp.exp(s2 - m)                           # (TB, N)
        denom = e1 + jnp.sum(e2, axis=-1, keepdims=True)
        inv = pl.reciprocal(denom, approx=False)       # exact (keeps 1e-5 atol)
        out = jnp.concatenate([e1, e2], axis=-1) * inv  # (TB, N+1) built in registers
        o_ref[...] = out.astype(o_ref.dtype)           # single dense store
    else:
        # one-hot(argmax([z1, z2])): index 0 wins ties, then first max column of z2.
        z1 = 1.0 - s
        z2 = qy * w
        m2 = jnp.max(z2, axis=-1, keepdims=True)
        cols = lax.broadcasted_iota(jnp.int32, z2.shape, 1)
        first_max = jnp.min(jnp.where(z2 == m2, cols, jnp.int32(n)),
                            axis=-1, keepdims=True)
        best = jnp.where(z1 >= m2, jnp.int32(0), first_max + 1)   # (TB, 1)
        cols_out = lax.broadcasted_iota(jnp.int32, (tb, n_out), 1)
        o_ref[...] = (cols_out == best).astype(o_ref.dtype)       # single dense store


def maxweight_forward(x, weights, temperature=1.0, training=True, block_batch=None):
    """Pallas TPU implementation of MaxWeightNetwork.forward. Returns (B, N+1)."""
    B, two_n = x.shape
    n = two_n // 2
    n_out = n + 1
    dtype = x.dtype
    itemsize = jnp.dtype(dtype).itemsize
    sub = _sublane_multiple(dtype)

    # --- batch tile size: ~1-4 MiB per step, but >= 4 grid steps when B allows
    #     (pipelining on every gen, megacore sharding on v7x).
    if block_batch is None:
        bytes_per_row = (2 * n + n_out) * itemsize
        tb = (4 * 1024 * 1024) // max(1, bytes_per_row)
        tb = min(tb, max(sub, pl.cdiv(B, 4)), 4096)
    else:
        tb = int(block_batch)
    tb = max(sub, (tb // sub) * sub)

    grid = (pl.cdiv(B, tb),)    # ragged final block: Pallas mask-stores it

    # weights in f32 (precision vs. bf16 inputs); fold 1/T in for training.
    w2 = jnp.asarray(weights, jnp.float32).reshape(1, n)
    if training:
        w2 = w2 * jnp.float32(1.0 / float(temperature))

    kernel = functools.partial(_kernel, n=n, temperature=float(temperature),
                               training=bool(training))

    w_spec = pl.BlockSpec((1, n), lambda i: (0, 0))      # VMEM-resident weights
    if n % 128 == 0:
        # Lane-aligned: pass x twice; BlockSpecs carve Q / Y halves (no wrapper copy).
        in_specs = [pl.BlockSpec((tb, n), lambda i: (i, 0)),
                    pl.BlockSpec((tb, n), lambda i: (i, 1)),
                    w_spec]
        operands = (x, x, w2)
    else:
        # Unaligned N: split in the wrapper so kernel tiles are lane-contiguous
        # (block last dim == full array dim) -> no in-kernel relayout.
        q = x[:, :n]
        y = x[:, n:]
        in_specs = [pl.BlockSpec((tb, n), lambda i: (i, 0)),
                    pl.BlockSpec((tb, n), lambda i: (i, 0)),
                    w_spec]
        operands = (q, y, w2)

    # Explicit VMEM budget: double-buffered inputs + outputs + weights, with
    # headroom, clamped well under v7x's 64 MiB physical per-TC VMEM.
    footprint = 2 * (2 * tb * n * itemsize) + 2 * (tb * n_out * itemsize) + 2 * n * 4
    vmem_limit = int(min(max(4 * footprint, 32 * 1024 * 1024), 48 * 1024 * 1024))

    return pl.pallas_call(
        kernel,
        out_shape=jax.ShapeDtypeStruct((B, n_out), dtype),
        grid=grid,
        in_specs=in_specs,
        out_specs=pl.BlockSpec((tb, n_out), lambda i: (i, 0)),
        compiler_params=pltpu.CompilerParams(
            dimension_semantics=("parallel",),   # shard batch tiles across TCs (v7x)
            vmem_limit_bytes=vmem_limit,
        ),
    )(*operands)


if __name__ == "__main__":
    key = jax.random.PRNGKey(0)

    def reference(x, w, temperature, training):
        n = x.shape[1] // 2
        q, y = x[:, :n], x[:, n:]
        qy = q * y
        z1 = 1.0 - jnp.sum(qy, axis=-1, keepdims=True)
        z2 = qy * w[None, :]
        z = jnp.concatenate([z1, z2], axis=-1)
        if training:
            return jax.nn.softmax(z / temperature, axis=-1)
        return jax.nn.one_hot(jnp.argmax(z, axis=-1), n + 1, dtype=x.dtype)

    cases = [
        dict(B=16, N=8, temperature=1.0),      # unaligned N (wrapper-split path)
        dict(B=100, N=128, temperature=0.7),   # aligned N, multi-step grid, ragged last block
    ]

    for c in cases:
        B, N, T = c["B"], c["N"], c["temperature"]
        kx, kw = jax.random.split(jax.random.fold_in(key, 1000 * B + N), 2)
        x = jax.random.normal(kx, (B, 2 * N), dtype=jnp.float32)
        w = jax.random.normal(kw, (N,), dtype=jnp.float32) * 0.1

        out_tr = maxweight_forward(x, w, temperature=T, training=True)
        out_ev = maxweight_forward(x, w, temperature=T, training=False)
        jax.block_until_ready((out_tr, out_ev))

        ref_tr = reference(x, w, T, True)
        ref_ev = reference(x, w, T, False)
        assert out_tr.shape == ref_tr.shape and out_ev.shape == ref_ev.shape
        assert jnp.allclose(out_tr, ref_tr, atol=1e-5), f"train mismatch B={B} N={N}"
        assert jnp.allclose(out_ev, ref_ev), f"eval mismatch B={B} N={N}"

    print("KERNEL_OK")
</pallas_src>

<mosaic_0001>
module attributes {stable_mosaic.version = 11 : i64} {
  func.func @_kernel(%arg0: i32, %arg1: memref<8x8xf32, #tpu.memory_space<vmem>>, %arg2: memref<8x8xf32, #tpu.memory_space<vmem>>, %arg3: memref<1x8xf32, #tpu.memory_space<vmem>>, %arg4: memref<8x9xf32, #tpu.memory_space<vmem>>) attributes {dimension_semantics = [#tpu.dimension_semantics<parallel>], iteration_bounds = array<i64: 2>, scalar_prefetch = 0 : i64, scratch_operands = 0 : i64, tpu.core_type = #tpu.core_type<tc>, window_params = [{transform_indices = @transform_0, window_bounds = array<i64: 8, 8>}, {transform_indices = @transform_1, window_bounds = array<i64: 8, 8>}, {pipeline_mode = #tpu.pipeline_mode<synchronous>, transform_indices = @transform_2, window_bounds = array<i64: 1, 8>}, {transform_indices = @transform_3, window_bounds = array<i64: 8, 9>}]} {
    %c0 = arith.constant 0 : index
    %c0_0 = arith.constant 0 : index
    %0 = vector.load %arg1[%c0, %c0_0] : memref<8x8xf32, #tpu.memory_space<vmem>>, vector<8x8xf32>
    %c0_1 = arith.constant 0 : index
    %c0_2 = arith.constant 0 : index
    %1 = vector.load %arg2[%c0_1, %c0_2] : memref<8x8xf32, #tpu.memory_space<vmem>>, vector<8x8xf32>
    %c0_3 = arith.constant 0 : index
    %c0_4 = arith.constant 0 : index
    %2 = vector.load %arg3[%c0_3, %c0_4] : memref<1x8xf32, #tpu.memory_space<vmem>>, vector<1x8xf32>
    %3 = arith.mulf %0, %1 : vector<8x8xf32>
    %cst = arith.constant dense<0.000000e+00> : vector<8xf32>
    %4 = vector.multi_reduction <add>, %3, %cst [1] : vector<8x8xf32> to vector<8xf32>
    %5 = vector.shape_cast %4 : vector<8xf32> to vector<8x1xf32>
    %cst_5 = arith.constant 1.000000e+00 : f32
    %6 = vector.broadcast %cst_5 : f32 to vector<8x1xf32>
    %7 = arith.subf %6, %5 : vector<8x1xf32>
    %cst_6 = arith.constant 1.000000e+00 : f32
    %8 = vector.broadcast %cst_6 : f32 to vector<8x1xf32>
    %9 = arith.mulf %7, %8 : vector<8x1xf32>
    %10 = vector.broadcast %2 : vector<1x8xf32> to vector<8x8xf32>
    %11 = arith.mulf %3, %10 : vector<8x8xf32>
    %cst_7 = arith.constant dense<0xFF800000> : vector<8xf32>
    %12 = vector.multi_reduction <maximumf>, %11, %cst_7 [1] : vector<8x8xf32> to vector<8xf32>
    %13 = vector.shape_cast %12 : vector<8xf32> to vector<8x1xf32>
    %14 = arith.maximumf %9, %13 : vector<8x1xf32>
    %15 = arith.subf %9, %14 : vector<8x1xf32>
    %16 = math.exp %15 : vector<8x1xf32>
    %17 = vector.broadcast %14 : vector<8x1xf32> to vector<8x8xf32>
    %18 = arith.subf %11, %17 : vector<8x8xf32>
    %19 = math.exp %18 : vector<8x8xf32>
    %cst_8 = arith.constant dense<0.000000e+00> : vector<8xf32>
    %20 = vector.multi_reduction <add>, %19, %cst_8 [1] : vector<8x8xf32> to vector<8xf32>
    %21 = vector.shape_cast %20 : vector<8xf32> to vector<8x1xf32>
    %22 = arith.addf %16, %21 : vector<8x1xf32>
    %23 = tpu.reciprocal %22 : vector<8x1xf32> -> vector<8x1xf32>
    %24 = tpu.concatenate %16, %19 in 1 : vector<8x1xf32>, vector<8x8xf32> -> vector<8x9xf32>
    %25 = vector.broadcast %23 : vector<8x1xf32> to vector<8x9xf32>
    %26 = arith.mulf %24, %25 : vector<8x9xf32>
    %c0_9 = arith.constant 0 : index
    %c0_10 = arith.constant 0 : index
    %27 = vector.load %arg4[%c0_9, %c0_10] : memref<8x9xf32, #tpu.memory_space<vmem>>, vector<8x9xf32>
    tpu.vector_store %arg4[%c0_9, %c0_10], %26 {strides = array<i32>} : memref<8x9xf32, #tpu.memory_space<vmem>>, vector<8x9xf32>,
    return
  }
  func.func @transform_0(%arg0: i32) -> (i32, i32) {
    %c0_i32 = arith.constant 0 : i32
    %c0_i32_0 = arith.constant 0 : i32
    return %arg0, %c0_i32 : i32, i32
  }
  func.func @transform_1(%arg0: i32) -> (i32, i32) {
    %c0_i32 = arith.constant 0 : i32
    %c0_i32_0 = arith.constant 0 : i32
    return %arg0, %c0_i32 : i32, i32
  }
  func.func @transform_2(%arg0: i32) -> (i32, i32) {
    %c0_i32 = arith.constant 0 : i32
    %c0_i32_0 = arith.constant 0 : i32
    %c0_i32_1 = arith.constant 0 : i32
    return %c0_i32, %c0_i32_0 : i32, i32
  }
  func.func @transform_3(%arg0: i32) -> (i32, i32) {
    %c0_i32 = arith.constant 0 : i32
    %c0_i32_0 = arith.constant 0 : i32
    return %arg0, %c0_i32 : i32, i32
  }
}

</mosaic_0001>

<llo_original>
// kernel: tpu_custom_call.1
$region0: #{tpu_custom_call.1}
  #allocation0 [shape = 'u32[]', space=smem, size = 0x4, offset = 0x4, fixed_abs, tag = 'smem constant byte address 0x4 - core index']
  #allocation1 [shape = 'u32[72,128]{1,0:T(1,128)}', space=vmem, size = 0x9000, scoped, tag = 'internal scratch']
  %s0 = inlined_call_operand.vmem [shape: f32[16,8], index: 0, kind: input, shape index: {}]
  %s1 = inlined_call_operand.vmem [shape: f32[16,8], index: 1, kind: input, shape index: {}]
  %s2 = inlined_call_operand.vmem [shape: f32[1,8], index: 2, kind: input, shape index: {}]
  %s3 = inlined_call_operand.hbm [shape: f32[16,9], index: 3, kind: output, shape index: {}]
  %s4 = sld [smem:[#allocation0]]
  $region45: #{tpu_custom_call.1} parent=0
    _
  %s6 = ssub.s32 1, %s4
  %s7 = scalar_select 0, %s6, %s4
  $region1: #{tpu_custom_call.1} parent=0
    #allocation2 [shape = 'u8[8192]{0}', space=vmem, size = 0x2000, scoped, tag = 'output window, operand 0']
    #allocation3 [shape = 's32[2]{0}', space=sflag, size = 0x8, scoped, tag = 'scoped memory for tpu_custom_call.1']
    %8 = vsyncpa [#allocation3], 0
    %s9 = scalar_lea.sflag [#allocation3], 1
    %10 = vsyncpa %s9, 0
    loop: start=0, step=1, limit=4
    $region2: #{tpu_custom_call.1} parent=1 // loop_pre_header
      _
    $region3: #{tpu_custom_call.1} parent=1 // loop_header
      %s12 = sphi 0, %s16
      %p13 = scmp.ge.s32.totalorder %s12, 4
      %s22 = sphi 0, %s24
      %s25 = sphi 0, %s22
      %s26 = sphi 0, %s25
      %s42 = sphi 0, %s26
      %s48 = sphi 0, %s50
      %s51 = sphi 0, %s48
      %s52 = sphi 0, %s51
      %s68 = sphi 0, %s52
      %s72 = sphi 0, %s72
      %s74 = sphi 0, %s72
      %s75 = sphi 0, %s74
      %s89 = sphi 0, %s75
      %s95 = sphi 0, %s97
      %s98 = sphi 0, %s95
      %s99 = sphi 0, %s98
      %s115 = sphi 0, %s99
    $region4: #{tpu_custom_call.1} parent=1 // loop_header_branch
      %15 = sbr.rel (%p13) target = $region8
    $region5: #{tpu_custom_call.1} parent=1 // loop_body
      %s17 = ssub.s32 %s12, 1
      %s18 = ssub.s32 %s12, 2
      %s19 = sadd.s32 %s12, 1
      %s20 = ssub.s32 %s12, %s19
      %p21 = scmp.eq.s32.totalorder %s20, 0
      %s23 = sadd.s32 %s22, 1
      %s24 = scalar_select %p21, %s22, %s23
      %p27 = pneg %p21
      %p28 = scmp.eq.s32.totalorder %s12, 1
      %p29 = por %p27, %p28
      %p30 = scmp.ne.s32.totalorder %s22, %s25
      %p31 = scmp.eq.s32.totalorder %s12, 0
      %p32 = por %p30, %p31
      %p33 = scmp.ne.s32.totalorder %s22, %s25
      %p34 = scmp.eq.s32.totalorder %s17, 1
      %p35 = por %p33, %p34
      %p36 = scmp.ne.s32.totalorder %s25, %s26
      %p37 = scmp.eq.s32.totalorder %s17, 0
      %p38 = por %p36, %p37
      %p39 = scmp.ne.s32.totalorder %s25, %s26
      %p40 = scmp.eq.s32.totalorder %s18, 1
      %p41 = por %p39, %p40
      %p43 = scmp.ne.s32.totalorder %s26, %s42
      %p44 = scmp.eq.s32.totalorder %s18, 0
      %p45 = por %p43, %p44
      %s46 = ssub.s32 %s12, %s19
      %p47 = scmp.eq.s32.totalorder %s46, 0
      %s49 = sadd.s32 %s48, 1
      %s50 = scalar_select %p47, %s48, %s49
      %p53 = pneg %p47
      %p54 = scmp.eq.s32.totalorder %s12, 1
      %p55 = por %p53, %p54
      %p56 = scmp.ne.s32.totalorder %s48, %s51
      %p57 = scmp.eq.s32.totalorder %s12, 0
      %p58 = por %p56, %p57
      %p59 = scmp.ne.s32.totalorder %s48, %s51
      %p60 = scmp.eq.s32.totalorder %s17, 1
      %p61 = por %p59, %p60
      %p62 = scmp.ne.s32.totalorder %s51, %s52
      %p63 = scmp.eq.s32.totalorder %s17, 0
      %p64 = por %p62, %p63
      %p65 = scmp.ne.s32.totalorder %s51, %s52
      %p66 = scmp.eq.s32.totalorder %s18, 1
      %p67 = por %p65, %p66
      %p69 = scmp.ne.s32.totalorder %s52, %s68
      %p70 = scmp.eq.s32.totalorder %s18, 0
      %p71 = por %p69, %p70
      %s73 = sadd.s32 %s72, 1
      %p76 = scmp.eq.s32.totalorder %s12, 1
      %p77 = scmp.ne.s32.totalorder %s72, %s74
      %p78 = scmp.eq.s32.totalorder %s12, 0
      %p79 = por %p77, %p78
      %p80 = scmp.ne.s32.totalorder %s72, %s74
      %p81 = scmp.eq.s32.totalorder %s17, 1
      %p82 = por %p80, %p81
      %p83 = scmp.ne.s32.totalorder %s74, %s75
      %p84 = scmp.eq.s32.totalorder %s17, 0
      %p85 = por %p83, %p84
      %p86 = scmp.ne.s32.totalorder %s74, %s75
      %p87 = scmp.eq.s32.totalorder %s18, 1
      %p88 = por %p86, %p87
      %p90 = scmp.ne.s32.totalorder %s75, %s89
      %p91 = scmp.eq.s32.totalorder %s18, 0
      %p92 = por %p90, %p91
      %s93 = ssub.s32 %s12, %s19
      %p94 = scmp.eq.s32.totalorder %s93, 0
      %s96 = sadd.s32 %s95, 1
      %s97 = scalar_select %p94, %s95, %s96
      %p100 = pneg %p94
      %p101 = scmp.eq.s32.totalorder %s12, 1
      %p102 = por %p100, %p101
      %p103 = scmp.ne.s32.totalorder %s95, %s98
      %p104 = scmp.eq.s32.totalorder %s12, 0
      %p105 = por %p103, %p104
      %p106 = scmp.ne.s32.totalorder %s95, %s98
      %p107 = scmp.eq.s32.totalorder %s17, 1
      %p108 = por %p106, %p107
      %p109 = scmp.ne.s32.totalorder %s98, %s99
      %p110 = scmp.eq.s32.totalorder %s17, 0
      %p111 = por %p109, %p110
      %p112 = scmp.ne.s32.totalorder %s98, %s99
      %p113 = scmp.eq.s32.totalorder %s18, 1
      %p114 = por %p112, %p113
      %p116 = scmp.ne.s32.totalorder %s99, %s115
      %p117 = scmp.eq.s32.totalorder %s18, 0
      %p118 = por %p116, %p117
      %p119 = scmp.le.s32.totalorder 1, %s12
      %p120 = scmp.lt.s32.totalorder %s12, 3
      %p121 = pnand %p119, %p120
      %p122 = pneg %p121
      // Predicated region
      $region9: #{tpu_custom_call.1} parent=5 // pred_check
        _
      $region10: #{tpu_custom_call.1} parent=5 // pred_check_branch
        %124 = sbr.rel (%p121) target = $region12
      $region11: #{tpu_custom_call.1} parent=5 // pred_region
        %s125 = ssub.s32 %s12, 1
        // Predicated region
        $region13: #{tpu_custom_call.1} parent=11 // pred_check
          %p126 = pneg %p85
        $region14: #{tpu_custom_call.1} parent=11 // pred_check_branch
          %128 = sbr.rel (%p126) target = $region16
        $region15: #{tpu_custom_call.1} parent=11 // pred_region
          _
        $region16: #{tpu_custom_call.1} parent=11 // pred_fallthru
          _
      $region12: #{tpu_custom_call.1} parent=5 // pred_fallthru
        _
      %p129 = scmp.lt.s32.totalorder %s12, 2
      // Predicated region
      $region17: #{tpu_custom_call.1} parent=5 // pred_check
        %p130 = pneg %p129
      $region18: #{tpu_custom_call.1} parent=5 // pred_check_branch
        %132 = sbr.rel (%p130) target = $region20
      $region19: #{tpu_custom_call.1} parent=5 // pred_region
        // Predicated region
        $region21: #{tpu_custom_call.1} parent=19 // pred_check
          %p133 = pneg %p32
        $region22: #{tpu_custom_call.1} parent=19 // pred_check_branch
          %135 = sbr.rel (%p133) target = $region24
        $region23: #{tpu_custom_call.1} parent=19 // pred_region
          %p136 = scmp.lt.s32.totalorder %s12, 1
          %s137 = scalar_select %p136, %s12, 1
          %s138 = smul.addr %s137, 8
          %s139 = scalar_lea.vmem %s0, %s138
        $region24: #{tpu_custom_call.1} parent=19 // pred_fallthru
          _
        // Predicated region
        $region25: #{tpu_custom_call.1} parent=19 // pred_check
          %p140 = pneg %p58
        $region26: #{tpu_custom_call.1} parent=19 // pred_check_branch
          %142 = sbr.rel (%p140) target = $region28
        $region27: #{tpu_custom_call.1} parent=19 // pred_region
          %p143 = scmp.lt.s32.totalorder %s12, 1
          %s144 = scalar_select %p143, %s12, 1
          %s145 = smul.addr %s144, 8
          %s146 = scalar_lea.vmem %s1, %s145
        $region28: #{tpu_custom_call.1} parent=19 // pred_fallthru
          _
      $region20: #{tpu_custom_call.1} parent=5 // pred_fallthru
        _
      %p147 = scmp.le.s32.totalorder 1, %s12
      %p148 = scmp.lt.s32.totalorder %s12, 3
      %p149 = pnand %p147, %p148
      %p150 = pneg %p149
      // Predicated region
      $region29: #{tpu_custom_call.1} parent=5 // pred_check
        _
      $region30: #{tpu_custom_call.1} parent=5 // pred_check_branch
        %152 = sbr.rel (%p149) target = $region32
      $region31: #{tpu_custom_call.1} parent=5 // pred_region
        %s153 = ssub.s32 %s12, 1
        %p154 = scmp.lt.s32.totalorder %s17, 1
        %s155 = scalar_select %p154, %s17, 1
        %s156 = smul.addr %s155, 8
        %s157 = scalar_lea.vmem %s0, %s156
        %p158 = pneg %p38
        %p159 = pneg %p35
        %p160 = scmp.lt.s32.totalorder %s17, 1
        %s161 = scalar_select %p160, %s17, 1
        %s162 = smul.addr %s161, 8
        %s163 = scalar_lea.vmem %s1, %s162
        %p164 = pneg %p64
        %p165 = pneg %p61
        %p166 = pneg %p85
        %p167 = pneg %p82
        %p168 = pneg %p111
        %p169 = pneg %p108
        %s170 = sand.u32 %s98, 1
        %s171 = scalar_lea.sflag [#allocation3], %s170
        %s172 = sand.u32 %s98, 1
        %s173 = smul.addr %s172, 8
        %s174 = scalar_lea.vmem [#allocation2], %s173
        %p175 = scmp.lt.s32.totalorder %s17, 1
        %s176 = scalar_select %p175, %s17, 1
        %s177 = smul.addr %s176, 8
        %s178 = scalar_lea.vmem %s0, %s177
        %p179 = scmp.lt.s32.totalorder %s17, 1
        %s180 = scalar_select %p179, %s17, 1
        %s181 = smul.addr %s180, 8
        %s182 = scalar_lea.vmem %s1, %s181
        %v183 = vld [vmem:[%s178] sm:$0xff]
        %v184 = vld [vmem:[%s182] sm:$0xff]
        %v185 = vld [vmem:[%s2] sm:$0x1]
        %v186 = vmul.f32 %v183, %v184
        %vm187 = vcmask 64512
        %v188 = vsel %vm187, %v186, 0.0
        %189 = vadd.xlane.f32.xlu0 %v188
        %v190 = vpop.xlane.xlu0 %189
        %v191 = vsub.f32 1.0, %v190
        %v193 = vperm.slane %v185, 0
        %v195 = vmul.f32 %v186, %v193
        %v196 = vsel %vm187, %v195, -inf
        %197 = vmax.xlane.f32.xlu0 %v196
        %v198 = vpop.xlane.xlu0 %197
        %v199 = vmax.f32 %v191, %v198
        %v200 = vsub.f32 %v191, %v199
        %v201 = vmul.f32 %v200, 1.442695
        %v202 = vpow.pop %v201
        %v203 = vsub.f32 %v195, %v199
        %v204 = vmul.f32 %v203, 1.442695
        %v205 = vpow.pop %v204
        %v206 = vsel %vm187, %v205, 0.0
        %207 = vadd.xlane.f32.xlu0 %v206
        %v208 = vpop.xlane.xlu0 %207
        %v209 = vadd.f32 %v202, %v208
        %v210 = vrcp.pop %v209
        %v211 = vmul.f32 %v209, %v210
        %v212 = vsub.f32 1.0, %v211
        %v213 = vmul.f32 %v210, %v212
        %v214 = vadd.f32 %v210, %v213
        %vm215 = vweird.f32 %v209
        %vm216 = vweird.f32 %v210
        %vm217 = vmor %vm215, %vm216
        %v218 = vsel %vm217, %v210, %v214
        %v219 = vand.u32 2147483647, %v209
        %vm220 = vcmp.eq.f32.partialorder %v219, 8.507059e+37
        %v221 = vand.u32 %v209, 2147483648
        %v222 = vor.u32 1.1754944e-38, %v221
        %v223 = vsel %vm220, %v222, %v218
        %225 = vrot.lane.b32.xlu0 %v205, 1
        %v226 = vpop.permute.xlu0 %225
        %vm228 = vcmask 7168
        %v229 = vsel %vm228, %v202, %v226
        %v230 = vmul.f32 %v229, %v223
        %vm231 = vcmask 72704
        %232 = vst.msk [vmem:[%s174] sm:$0xff] %vm231, %v230
        %s233 = sand.u32 %s98, 1
        %s234 = scalar_lea.sflag [#allocation3], %s233
        %s235 = sand.u32 %s98, 1
        %s236 = smul.addr %s235, 8
        %s237 = scalar_lea.vmem [#allocation2], %s236
        // Predicated region
        $region33: #{tpu_custom_call.1} parent=31 // pred_check
          %p238 = pneg %p108
        $region34: #{tpu_custom_call.1} parent=31 // pred_check_branch
          %240 = sbr.rel (%p238) target = $region36
        $region35: #{tpu_custom_call.1} parent=31 // pred_region
          %242 = vsyncadd %s234, 0
          %s243 = smul.addr %s17, 8
          %s244 = scalar_lea.hbm %s3, %s243
          %s246 = sshll.u32 %s237, 4
          %s247 = int_to_ptr.vmem [resolvable:$true] %s246
          %s248 = sshll.u32 %s244, 4
          %s249 = int_to_ptr.hbm [resolvable:$true] %s248
          %251 = dma.vmem_to_hbm [thread:$0]  %s247, 128, %s249, %s234
        $region36: #{tpu_custom_call.1} parent=31 // pred_fallthru
          _
      $region32: #{tpu_custom_call.1} parent=5 // pred_fallthru
        _
      %p252 = scmp.le.s32.totalorder 2, %s12
      // Predicated region
      $region37: #{tpu_custom_call.1} parent=5 // pred_check
        %p253 = pneg %p252
      $region38: #{tpu_custom_call.1} parent=5 // pred_check_branch
        %255 = sbr.rel (%p253) target = $region40
      $region39: #{tpu_custom_call.1} parent=5 // pred_region
        %s256 = ssub.s32 %s12, 2
        // Predicated region
        $region41: #{tpu_custom_call.1} parent=39 // pred_check
          %p257 = pneg %p114
        $region42: #{tpu_custom_call.1} parent=39 // pred_check_branch
          %259 = sbr.rel (%p257) target = $region44
        $region43: #{tpu_custom_call.1} parent=39 // pred_region
          %s260 = sand.u32 %s99, 1
          %s261 = scalar_lea.sflag [#allocation3], %s260
          %s262 = sand.u32 %s99, 1
          %s263 = smul.addr %s262, 8
          %s264 = scalar_lea.vmem [#allocation2], %s263
          %266 = dma.done %s261, 128
        $region44: #{tpu_custom_call.1} parent=39 // pred_fallthru
          _
      $region40: #{tpu_custom_call.1} parent=5 // pred_fallthru
        _
    $region6: #{tpu_custom_call.1} parent=1 // loop_footer
      %s16 = sadd.s32 1, %s12
    $region7: #{tpu_custom_call.1} parent=1 // loop_footer_branch
      %11 = sbr.rel target = $region3
    $region8: #{tpu_custom_call.1} parent=1 // loop_exit
      _
    %267 = vsyncpa [#allocation3], 1
    %s268 = scalar_lea.sflag [#allocation3], 1
    %269 = vsyncpa %s268, 1

</llo_original>
